<compile_context>
chip_gen: v6e
topology: v6e:2x2x1
jax: 0.10.0
libtpu: 0.0.40
codegen_flags: <defaults>
</compile_context>

<pallas_src>
import math

import jax
import jax.numpy as jnp
import numpy as np
from jax import lax
from jax.experimental import pallas as pl
from jax.experimental.pallas import tpu as pltpu


def lstm_fc_kernel(x_ref, wih_ref, whh_ref, b_ref, wfc_ref, bfc_ref, out_ref):
    """Single-layer LSTM over T steps + final Linear on the last hidden state.

    x_ref   : (T*BP, I)   time-major input, flattened over (T, padded batch)
    wih_ref : (I, 4H)     input->gates weights (transposed torch weight_ih)
    whh_ref : (4H, 4H)    hidden->gates weights, rows [H:) zero-padded
    b_ref   : (1, 4H)     b_ih + b_hh
    wfc_ref : (4H, 128)   fc weights, rows [H:) and cols [O:) zero-padded
    bfc_ref : (1, 128)    fc bias, cols [O:) zero-padded
    out_ref : (BP, 128)   lane-dense output block (real output in [:B, :O])
    """
    TB, _ = x_ref.shape
    G = whh_ref.shape[0]          # 4H (full gate / padded hidden width) == 128
    H = G // 4
    BP = out_ref.shape[0]         # sublane-padded batch (multiple of 8)
    T = TB // BP

    # ---- hoisted input projection: one batched matmul, bias folded in ------
    xg = (
        jnp.dot(x_ref[...], wih_ref[...], preferred_element_type=jnp.float32)
        + b_ref[...]
    )  # (T*BP, 4H)

    whh = whh_ref[...]

    # Loop-invariant per-lane affine constants implementing, with ONE tanh:
    #   g lanes [2H,3H):  tanh(x)
    #   i/f/o lanes:      sigmoid(x) = 0.5 * tanh(0.5 * x) + 0.5
    lane = lax.broadcasted_iota(jnp.int32, (BP, G), 1)
    g_lane = (lane >= 2 * H) & (lane < 3 * H)
    half = jnp.full((BP, G), 0.5, jnp.float32)
    scale = jnp.where(g_lane, jnp.ones((BP, G), jnp.float32), half)
    mul = scale                                   # same values: 1 on g, 0.5 else
    off = jnp.where(g_lane, jnp.zeros((BP, G), jnp.float32), half)

    # Carries kept full-lane-width; only lanes [0, H) are meaningful.  The
    # zero-padded rows of whh / wfc guarantee the extra lanes never leak.
    # (Junk lanes of c accumulate bounded |act|<=1 garbage per step — harmless
    #  at T=8 / f32; revisit for very long sequences in reduced precision.)
    h = jnp.zeros((BP, G), jnp.float32)
    c = jnp.zeros((BP, G), jnp.float32)

    # Fully unrolled recurrence (T is small & static).
    for t in range(T):
        xg_t = xg[t * BP:(t + 1) * BP, :]         # whole-vreg static slice
        gates = xg_t + jnp.dot(h, whh, preferred_element_type=jnp.float32)
        # Single EUP pass for all four gates.
        act = off + mul * jnp.tanh(scale * gates)
        # Align f / g / o onto the i lanes with XLU rotates (np.roll semantics).
        f_a = pltpu.roll(act, 3 * H, 1)           # lanes [0,H) now hold f
        g_a = pltpu.roll(act, 2 * H, 1)           # lanes [0,H) now hold g
        o_a = pltpu.roll(act, 1 * H, 1)           # lanes [0,H) now hold o
        c = f_a * c + act * g_a                   # lanes [0,H) = true cell state
        h = o_a * jnp.tanh(c)                     # lanes [0,H) = true hidden state

    # Final FC on the last hidden state; padded weight rows zero out junk lanes.
    out_ref[...] = (
        jnp.dot(h, wfc_ref[...], preferred_element_type=jnp.float32)
        + bfc_ref[...]
    )


def lstm_price_predictor(x, params):
    """x: (B, T, I) float32 (batch_first, like the PyTorch module). Returns (B, O)."""
    wih_t, whh_t, b, wfc_t, bfc = params
    B, T, I = x.shape
    H = whh_t.shape[0]
    O = wfc_t.shape[1]
    G = 4 * H
    O_PAD = 128
    B_PAD = ((B + 7) // 8) * 8            # pad batch to a full sublane group

    # The lane-mask / roll arithmetic and single-vreg carries assume 4H == 128.
    assert G == 128, f"kernel assumes 4*hidden_size == 128, got {G}"
    assert O <= O_PAD

    # Pad batch with zero rows; padded rows compute a harmless LSTM-on-zeros.
    x_pad = jnp.zeros((B_PAD, T, I), jnp.float32).at[:B].set(x)
    # Time-major, flattened to (T*B_PAD, I) so the kernel hoists x @ W_ih out of
    # the recurrence as one matmul.
    x2d = jnp.transpose(x_pad, (1, 0, 2)).reshape(T * B_PAD, I)

    # Zero-pad weights: full-lane-width recurrence + lane-dense FC output.
    whh_pad = jnp.zeros((G, G), jnp.float32).at[:H, :].set(whh_t)
    wfc_pad = jnp.zeros((G, O_PAD), jnp.float32).at[:H, :O].set(wfc_t)
    bfc_pad = jnp.zeros((1, O_PAD), jnp.float32).at[:, :O].set(bfc)

    vmem = pl.BlockSpec(memory_space=pltpu.MemorySpace.VMEM)

    # No grid: single invocation, nothing to pipeline (total footprint ~130 KB,
    # far under VMEM on v5e/v6e/v7x), so skip per-grid-step bookkeeping.
    out_pad = pl.pallas_call(
        lstm_fc_kernel,
        in_specs=[vmem, vmem, vmem, vmem, vmem, vmem],
        out_specs=vmem,
        out_shape=jax.ShapeDtypeStruct((B_PAD, O_PAD), jnp.float32),
    )(x2d, wih_t, whh_pad, b, wfc_pad, bfc_pad)

    return out_pad[:B, :O]


def init_params(key, input_size, hidden_size, output_size):
    """Deterministic init matching PyTorch's U(-1/sqrt(H), 1/sqrt(H)) scheme."""
    k = 1.0 / math.sqrt(hidden_size)
    keys = jax.random.split(key, 6)
    u = lambda kk, shape: jax.random.uniform(kk, shape, jnp.float32, -k, k)
    w_ih = u(keys[0], (4 * hidden_size, input_size))   # torch weight_ih_l0
    w_hh = u(keys[1], (4 * hidden_size, hidden_size))  # torch weight_hh_l0
    b_ih = u(keys[2], (4 * hidden_size,))
    b_hh = u(keys[3], (4 * hidden_size,))
    w_fc = u(keys[4], (output_size, hidden_size))      # torch fc.weight
    b_fc = u(keys[5], (output_size,))
    # Pre-transpose / combine for the kernel.
    return (
        w_ih.T,                               # (I, 4H)
        w_hh.T,                               # (H, 4H)
        (b_ih + b_hh).reshape(1, -1),         # (1, 4H)
        w_fc.T,                               # (H, O)
        b_fc.reshape(1, -1),                  # (1, O)
    )


def reference_forward(x, params):
    """Pure-JAX reference (mirrors PyTorch nn.LSTM + nn.Linear semantics)."""
    wih_t, whh_t, b, wfc_t, bfc = params
    B, T, _ = x.shape
    H = whh_t.shape[0]
    h = jnp.zeros((B, H), jnp.float32)
    c = jnp.zeros((B, H), jnp.float32)
    for t in range(T):
        gates = x[:, t, :] @ wih_t + h @ whh_t + b
        i_g = jax.nn.sigmoid(gates[:, 0 * H:1 * H])
        f_g = jax.nn.sigmoid(gates[:, 1 * H:2 * H])
        g_g = jnp.tanh(gates[:, 2 * H:3 * H])
        o_g = jax.nn.sigmoid(gates[:, 3 * H:4 * H])
        c = f_g * c + i_g * g_g
        h = o_g * jnp.tanh(c)
    return h @ wfc_t + bfc


if __name__ == "__main__":
    B, T, I = 2, 8, 8          # batch, sequence length, input features
    H, O = 32, 5               # hidden_size, forecast_horizon

    key = jax.random.PRNGKey(0)
    kx, kp = jax.random.split(key)
    x = jax.random.normal(kx, (B, T, I), dtype=jnp.float32)
    params = init_params(kp, I, H, O)

    out = lstm_price_predictor(x, params)
    out = jax.block_until_ready(out)

    ref = jax.block_until_ready(reference_forward(x, params))
    assert out.shape == (B, O)
    np.testing.assert_allclose(np.asarray(out), np.asarray(ref), rtol=1e-5, atol=1e-5)

    print("KERNEL_OK")
</pallas_src>

<mosaic_0001>
module attributes {stable_mosaic.version = 11 : i64} {
  func.func @lstm_fc_kernel(%arg0: memref<64x8xf32, #tpu.memory_space<vmem>>, %arg1: memref<8x128xf32, #tpu.memory_space<vmem>>, %arg2: memref<128x128xf32, #tpu.memory_space<vmem>>, %arg3: memref<1x128xf32, #tpu.memory_space<vmem>>, %arg4: memref<128x128xf32, #tpu.memory_space<vmem>>, %arg5: memref<1x128xf32, #tpu.memory_space<vmem>>, %arg6: memref<8x128xf32, #tpu.memory_space<vmem>>) attributes {dimension_semantics = [], scalar_prefetch = 0 : i64, scratch_operands = 0 : i64, tpu.core_type = #tpu.core_type<tc>} {
    %c0 = arith.constant 0 : index
    %c0_0 = arith.constant 0 : index
    %0 = vector.load %arg0[%c0, %c0_0] : memref<64x8xf32, #tpu.memory_space<vmem>>, vector<64x8xf32>
    %c0_1 = arith.constant 0 : index
    %c0_2 = arith.constant 0 : index
    %1 = vector.load %arg1[%c0_1, %c0_2] : memref<8x128xf32, #tpu.memory_space<vmem>>, vector<8x128xf32>
    %cst = arith.constant dense<0.000000e+00> : vector<64x128xf32>
    %2 = tpu.matmul %0, %1, %cst {dimension_numbers = #tpu.dot_dimension_numbers<[1], [0], [0], [1], [0, 0, 1, 1], [], []>} : vector<64x8xf32>, vector<8x128xf32>, vector<64x128xf32> -> vector<64x128xf32>
    %c0_3 = arith.constant 0 : index
    %c0_4 = arith.constant 0 : index
    %3 = vector.load %arg3[%c0_3, %c0_4] : memref<1x128xf32, #tpu.memory_space<vmem>>, vector<1x128xf32>
    %4 = vector.broadcast %3 : vector<1x128xf32> to vector<64x128xf32>
    %5 = arith.addf %2, %4 : vector<64x128xf32>
    %c0_5 = arith.constant 0 : index
    %c0_6 = arith.constant 0 : index
    %6 = vector.load %arg2[%c0_5, %c0_6] : memref<128x128xf32, #tpu.memory_space<vmem>>, vector<128x128xf32>
    %7 = tpu.iota {dimensions = array<i32: 1>} : vector<8x128xi32>
    %c64_i32 = arith.constant 64 : i32
    %8 = vector.broadcast %c64_i32 : i32 to vector<8x128xi32>
    %9 = arith.cmpi sge, %7, %8 : vector<8x128xi32>
    %c96_i32 = arith.constant 96 : i32
    %10 = vector.broadcast %c96_i32 : i32 to vector<8x128xi32>
    %11 = arith.cmpi slt, %7, %10 : vector<8x128xi32>
    %12 = arith.andi %9, %11 : vector<8x128xi1>
    %cst_7 = arith.constant 5.000000e-01 : f32
    %13 = vector.broadcast %cst_7 : f32 to vector<8x128xf32>
    %cst_8 = arith.constant 1.000000e+00 : f32
    %14 = vector.broadcast %cst_8 : f32 to vector<8x128xf32>
    %15 = arith.select %12, %14, %13 : vector<8x128xi1>, vector<8x128xf32>
    %cst_9 = arith.constant 0.000000e+00 : f32
    %16 = vector.broadcast %cst_9 : f32 to vector<8x128xf32>
    %17 = arith.select %12, %16, %13 : vector<8x128xi1>, vector<8x128xf32>
    %cst_10 = arith.constant 0.000000e+00 : f32
    %18 = vector.broadcast %cst_10 : f32 to vector<8x128xf32>
    %cst_11 = arith.constant 0.000000e+00 : f32
    %19 = vector.broadcast %cst_11 : f32 to vector<8x128xf32>
    %20 = vector.extract_strided_slice %5 {offsets = [0, 0], sizes = [8, 128], strides = [1, 1]} : vector<64x128xf32> to vector<8x128xf32>
    %cst_12 = arith.constant dense<0.000000e+00> : vector<8x128xf32>
    %21 = tpu.matmul %18, %6, %cst_12 {dimension_numbers = #tpu.dot_dimension_numbers<[1], [0], [0], [1], [0, 0, 1, 1], [], []>} : vector<8x128xf32>, vector<128x128xf32>, vector<8x128xf32> -> vector<8x128xf32>
    %22 = arith.addf %20, %21 : vector<8x128xf32>
    %23 = arith.mulf %15, %22 : vector<8x128xf32>
    %24 = math.tanh %23 : vector<8x128xf32>
    %25 = arith.mulf %15, %24 : vector<8x128xf32>
    %26 = arith.addf %17, %25 : vector<8x128xf32>
    %c96_i32_13 = arith.constant 96 : i32
    %27 = tpu.dynamic_rotate %26 by %c96_i32_13 dim 1 : vector<8x128xf32>, i32 -> vector<8x128xf32>
    %c64_i32_14 = arith.constant 64 : i32
    %28 = tpu.dynamic_rotate %26 by %c64_i32_14 dim 1 : vector<8x128xf32>, i32 -> vector<8x128xf32>
    %c32_i32 = arith.constant 32 : i32
    %29 = tpu.dynamic_rotate %26 by %c32_i32 dim 1 : vector<8x128xf32>, i32 -> vector<8x128xf32>
    %30 = arith.mulf %27, %19 : vector<8x128xf32>
    %31 = arith.mulf %26, %28 : vector<8x128xf32>
    %32 = arith.addf %30, %31 : vector<8x128xf32>
    %33 = math.tanh %32 : vector<8x128xf32>
    %34 = arith.mulf %29, %33 : vector<8x128xf32>
    %35 = vector.extract_strided_slice %5 {offsets = [8, 0], sizes = [8, 128], strides = [1, 1]} : vector<64x128xf32> to vector<8x128xf32>
    %cst_15 = arith.constant dense<0.000000e+00> : vector<8x128xf32>
    %36 = tpu.matmul %34, %6, %cst_15 {dimension_numbers = #tpu.dot_dimension_numbers<[1], [0], [0], [1], [0, 0, 1, 1], [], []>} : vector<8x128xf32>, vector<128x128xf32>, vector<8x128xf32> -> vector<8x128xf32>
    %37 = arith.addf %35, %36 : vector<8x128xf32>
    %38 = arith.mulf %15, %37 : vector<8x128xf32>
    %39 = math.tanh %38 : vector<8x128xf32>
    %40 = arith.mulf %15, %39 : vector<8x128xf32>
    %41 = arith.addf %17, %40 : vector<8x128xf32>
    %c96_i32_16 = arith.constant 96 : i32
    %42 = tpu.dynamic_rotate %41 by %c96_i32_16 dim 1 : vector<8x128xf32>, i32 -> vector<8x128xf32>
    %c64_i32_17 = arith.constant 64 : i32
    %43 = tpu.dynamic_rotate %41 by %c64_i32_17 dim 1 : vector<8x128xf32>, i32 -> vector<8x128xf32>
    %c32_i32_18 = arith.constant 32 : i32
    %44 = tpu.dynamic_rotate %41 by %c32_i32_18 dim 1 : vector<8x128xf32>, i32 -> vector<8x128xf32>
    %45 = arith.mulf %42, %32 : vector<8x128xf32>
    %46 = arith.mulf %41, %43 : vector<8x128xf32>
    %47 = arith.addf %45, %46 : vector<8x128xf32>
    %48 = math.tanh %47 : vector<8x128xf32>
    %49 = arith.mulf %44, %48 : vector<8x128xf32>
    %50 = vector.extract_strided_slice %5 {offsets = [16, 0], sizes = [8, 128], strides = [1, 1]} : vector<64x128xf32> to vector<8x128xf32>
    %cst_19 = arith.constant dense<0.000000e+00> : vector<8x128xf32>
    %51 = tpu.matmul %49, %6, %cst_19 {dimension_numbers = #tpu.dot_dimension_numbers<[1], [0], [0], [1], [0, 0, 1, 1], [], []>} : vector<8x128xf32>, vector<128x128xf32>, vector<8x128xf32> -> vector<8x128xf32>
    %52 = arith.addf %50, %51 : vector<8x128xf32>
    %53 = arith.mulf %15, %52 : vector<8x128xf32>
    %54 = math.tanh %53 : vector<8x128xf32>
    %55 = arith.mulf %15, %54 : vector<8x128xf32>
    %56 = arith.addf %17, %55 : vector<8x128xf32>
    %c96_i32_20 = arith.constant 96 : i32
    %57 = tpu.dynamic_rotate %56 by %c96_i32_20 dim 1 : vector<8x128xf32>, i32 -> vector<8x128xf32>
    %c64_i32_21 = arith.constant 64 : i32
    %58 = tpu.dynamic_rotate %56 by %c64_i32_21 dim 1 : vector<8x128xf32>, i32 -> vector<8x128xf32>
    %c32_i32_22 = arith.constant 32 : i32
    %59 = tpu.dynamic_rotate %56 by %c32_i32_22 dim 1 : vector<8x128xf32>, i32 -> vector<8x128xf32>
    %60 = arith.mulf %57, %47 : vector<8x128xf32>
    %61 = arith.mulf %56, %58 : vector<8x128xf32>
    %62 = arith.addf %60, %61 : vector<8x128xf32>
    %63 = math.tanh %62 : vector<8x128xf32>
    %64 = arith.mulf %59, %63 : vector<8x128xf32>
    %65 = vector.extract_strided_slice %5 {offsets = [24, 0], sizes = [8, 128], strides = [1, 1]} : vector<64x128xf32> to vector<8x128xf32>
    %cst_23 = arith.constant dense<0.000000e+00> : vector<8x128xf32>
    %66 = tpu.matmul %64, %6, %cst_23 {dimension_numbers = #tpu.dot_dimension_numbers<[1], [0], [0], [1], [0, 0, 1, 1], [], []>} : vector<8x128xf32>, vector<128x128xf32>, vector<8x128xf32> -> vector<8x128xf32>
    %67 = arith.addf %65, %66 : vector<8x128xf32>
    %68 = arith.mulf %15, %67 : vector<8x128xf32>
    %69 = math.tanh %68 : vector<8x128xf32>
    %70 = arith.mulf %15, %69 : vector<8x128xf32>
    %71 = arith.addf %17, %70 : vector<8x128xf32>
    %c96_i32_24 = arith.constant 96 : i32
    %72 = tpu.dynamic_rotate %71 by %c96_i32_24 dim 1 : vector<8x128xf32>, i32 -> vector<8x128xf32>
    %c64_i32_25 = arith.constant 64 : i32
    %73 = tpu.dynamic_rotate %71 by %c64_i32_25 dim 1 : vector<8x128xf32>, i32 -> vector<8x128xf32>
    %c32_i32_26 = arith.constant 32 : i32
    %74 = tpu.dynamic_rotate %71 by %c32_i32_26 dim 1 : vector<8x128xf32>, i32 -> vector<8x128xf32>
    %75 = arith.mulf %72, %62 : vector<8x128xf32>
    %76 = arith.mulf %71, %73 : vector<8x128xf32>
    %77 = arith.addf %75, %76 : vector<8x128xf32>
    %78 = math.tanh %77 : vector<8x128xf32>
    %79 = arith.mulf %74, %78 : vector<8x128xf32>
    %80 = vector.extract_strided_slice %5 {offsets = [32, 0], sizes = [8, 128], strides = [1, 1]} : vector<64x128xf32> to vector<8x128xf32>
    %cst_27 = arith.constant dense<0.000000e+00> : vector<8x128xf32>
    %81 = tpu.matmul %79, %6, %cst_27 {dimension_numbers = #tpu.dot_dimension_numbers<[1], [0], [0], [1], [0, 0, 1, 1], [], []>} : vector<8x128xf32>, vector<128x128xf32>, vector<8x128xf32> -> vector<8x128xf32>
    %82 = arith.addf %80, %81 : vector<8x128xf32>
    %83 = arith.mulf %15, %82 : vector<8x128xf32>
    %84 = math.tanh %83 : vector<8x128xf32>
    %85 = arith.mulf %15, %84 : vector<8x128xf32>
    %86 = arith.addf %17, %85 : vector<8x128xf32>
    %c96_i32_28 = arith.constant 96 : i32
    %87 = tpu.dynamic_rotate %86 by %c96_i32_28 dim 1 : vector<8x128xf32>, i32 -> vector<8x128xf32>
    %c64_i32_29 = arith.constant 64 : i32
    %88 = tpu.dynamic_rotate %86 by %c64_i32_29 dim 1 : vector<8x128xf32>, i32 -> vector<8x128xf32>
    %c32_i32_30 = arith.constant 32 : i32
    %89 = tpu.dynamic_rotate %86 by %c32_i32_30 dim 1 : vector<8x128xf32>, i32 -> vector<8x128xf32>
    %90 = arith.mulf %87, %77 : vector<8x128xf32>
    %91 = arith.mulf %86, %88 : vector<8x128xf32>
    %92 = arith.addf %90, %91 : vector<8x128xf32>
    %93 = math.tanh %92 : vector<8x128xf32>
    %94 = arith.mulf %89, %93 : vector<8x128xf32>
    %95 = vector.extract_strided_slice %5 {offsets = [40, 0], sizes = [8, 128], strides = [1, 1]} : vector<64x128xf32> to vector<8x128xf32>
    %cst_31 = arith.constant dense<0.000000e+00> : vector<8x128xf32>
    %96 = tpu.matmul %94, %6, %cst_31 {dimension_numbers = #tpu.dot_dimension_numbers<[1], [0], [0], [1], [0, 0, 1, 1], [], []>} : vector<8x128xf32>, vector<128x128xf32>, vector<8x128xf32> -> vector<8x128xf32>
    %97 = arith.addf %95, %96 : vector<8x128xf32>
    %98 = arith.mulf %15, %97 : vector<8x128xf32>
    %99 = math.tanh %98 : vector<8x128xf32>
    %100 = arith.mulf %15, %99 : vector<8x128xf32>
    %101 = arith.addf %17, %100 : vector<8x128xf32>
    %c96_i32_32 = arith.constant 96 : i32
    %102 = tpu.dynamic_rotate %101 by %c96_i32_32 dim 1 : vector<8x128xf32>, i32 -> vector<8x128xf32>
    %c64_i32_33 = arith.constant 64 : i32
    %103 = tpu.dynamic_rotate %101 by %c64_i32_33 dim 1 : vector<8x128xf32>, i32 -> vector<8x128xf32>
    %c32_i32_34 = arith.constant 32 : i32
    %104 = tpu.dynamic_rotate %101 by %c32_i32_34 dim 1 : vector<8x128xf32>, i32 -> vector<8x128xf32>
    %105 = arith.mulf %102, %92 : vector<8x128xf32>
    %106 = arith.mulf %101, %103 : vector<8x128xf32>
    %107 = arith.addf %105, %106 : vector<8x128xf32>
    %108 = math.tanh %107 : vector<8x128xf32>
    %109 = arith.mulf %104, %108 : vector<8x128xf32>
    %110 = vector.extract_strided_slice %5 {offsets = [48, 0], sizes = [8, 128], strides = [1, 1]} : vector<64x128xf32> to vector<8x128xf32>
    %cst_35 = arith.constant dense<0.000000e+00> : vector<8x128xf32>
    %111 = tpu.matmul %109, %6, %cst_35 {dimension_numbers = #tpu.dot_dimension_numbers<[1], [0], [0], [1], [0, 0, 1, 1], [], []>} : vector<8x128xf32>, vector<128x128xf32>, vector<8x128xf32> -> vector<8x128xf32>
    %112 = arith.addf %110, %111 : vector<8x128xf32>
    %113 = arith.mulf %15, %112 : vector<8x128xf32>
    %114 = math.tanh %113 : vector<8x128xf32>
    %115 = arith.mulf %15, %114 : vector<8x128xf32>
    %116 = arith.addf %17, %115 : vector<8x128xf32>
    %c96_i32_36 = arith.constant 96 : i32
    %117 = tpu.dynamic_rotate %116 by %c96_i32_36 dim 1 : vector<8x128xf32>, i32 -> vector<8x128xf32>
    %c64_i32_37 = arith.constant 64 : i32
    %118 = tpu.dynamic_rotate %116 by %c64_i32_37 dim 1 : vector<8x128xf32>, i32 -> vector<8x128xf32>
    %c32_i32_38 = arith.constant 32 : i32
    %119 = tpu.dynamic_rotate %116 by %c32_i32_38 dim 1 : vector<8x128xf32>, i32 -> vector<8x128xf32>
    %120 = arith.mulf %117, %107 : vector<8x128xf32>
    %121 = arith.mulf %116, %118 : vector<8x128xf32>
    %122 = arith.addf %120, %121 : vector<8x128xf32>
    %123 = math.tanh %122 : vector<8x128xf32>
    %124 = arith.mulf %119, %123 : vector<8x128xf32>
    %125 = vector.extract_strided_slice %5 {offsets = [56, 0], sizes = [8, 128], strides = [1, 1]} : vector<64x128xf32> to vector<8x128xf32>
    %cst_39 = arith.constant dense<0.000000e+00> : vector<8x128xf32>
    %126 = tpu.matmul %124, %6, %cst_39 {dimension_numbers = #tpu.dot_dimension_numbers<[1], [0], [0], [1], [0, 0, 1, 1], [], []>} : vector<8x128xf32>, vector<128x128xf32>, vector<8x128xf32> -> vector<8x128xf32>
    %127 = arith.addf %125, %126 : vector<8x128xf32>
    %128 = arith.mulf %15, %127 : vector<8x128xf32>
    %129 = math.tanh %128 : vector<8x128xf32>
    %130 = arith.mulf %15, %129 : vector<8x128xf32>
    %131 = arith.addf %17, %130 : vector<8x128xf32>
    %c96_i32_40 = arith.constant 96 : i32
    %132 = tpu.dynamic_rotate %131 by %c96_i32_40 dim 1 : vector<8x128xf32>, i32 -> vector<8x128xf32>
    %c64_i32_41 = arith.constant 64 : i32
    %133 = tpu.dynamic_rotate %131 by %c64_i32_41 dim 1 : vector<8x128xf32>, i32 -> vector<8x128xf32>
    %c32_i32_42 = arith.constant 32 : i32
    %134 = tpu.dynamic_rotate %131 by %c32_i32_42 dim 1 : vector<8x128xf32>, i32 -> vector<8x128xf32>
    %135 = arith.mulf %132, %122 : vector<8x128xf32>
    %136 = arith.mulf %131, %133 : vector<8x128xf32>
    %137 = arith.addf %135, %136 : vector<8x128xf32>
    %138 = math.tanh %137 : vector<8x128xf32>
    %139 = arith.mulf %134, %138 : vector<8x128xf32>
    %c0_43 = arith.constant 0 : index
    %c0_44 = arith.constant 0 : index
    %140 = vector.load %arg4[%c0_43, %c0_44] : memref<128x128xf32, #tpu.memory_space<vmem>>, vector<128x128xf32>
    %cst_45 = arith.constant dense<0.000000e+00> : vector<8x128xf32>
    %141 = tpu.matmul %139, %140, %cst_45 {dimension_numbers = #tpu.dot_dimension_numbers<[1], [0], [0], [1], [0, 0, 1, 1], [], []>} : vector<8x128xf32>, vector<128x128xf32>, vector<8x128xf32> -> vector<8x128xf32>
    %c0_46 = arith.constant 0 : index
    %c0_47 = arith.constant 0 : index
    %142 = vector.load %arg5[%c0_46, %c0_47] : memref<1x128xf32, #tpu.memory_space<vmem>>, vector<1x128xf32>
    %143 = vector.broadcast %142 : vector<1x128xf32> to vector<8x128xf32>
    %144 = arith.addf %141, %143 : vector<8x128xf32>
    %c0_48 = arith.constant 0 : index
    %c0_49 = arith.constant 0 : index
    %145 = vector.load %arg6[%c0_48, %c0_49] : memref<8x128xf32, #tpu.memory_space<vmem>>, vector<8x128xf32>
    tpu.vector_store %arg6[%c0_48, %c0_49], %144 {strides = array<i32>} : memref<8x128xf32, #tpu.memory_space<vmem>>, vector<8x128xf32>,
    return
  }
}

</mosaic_0001>

<llo_original>
// kernel: tpu_custom_call.1
$region0: #{tpu_custom_call.1}
  #allocation0 [shape = 'u32[]', space=smem, size = 0x4, offset = 0x4, fixed_abs, tag = 'smem constant byte address 0x4 - core index']
  #allocation1 [shape = 'u32[144,128]{1,0:T(1,128)}', space=vmem, size = 0x12000, scoped, tag = 'internal scratch']
  %s0 = inlined_call_operand.vmem [shape: f32[64,8], index: 0, kind: input, shape index: {}]
  %s1 = inlined_call_operand.vmem [shape: f32[8,128], index: 1, kind: input, shape index: {}]
  %s2 = inlined_call_operand.hbm [shape: f32[128,128], index: 2, kind: input, shape index: {}]
  %s3 = inlined_call_operand.vmem [shape: f32[1,128], index: 3, kind: input, shape index: {}]
  %s4 = inlined_call_operand.hbm [shape: f32[128,128], index: 4, kind: input, shape index: {}]
  %s5 = inlined_call_operand.vmem [shape: f32[1,128], index: 5, kind: input, shape index: {}]
  %s6 = inlined_call_operand.hbm [shape: f32[8,128], index: 6, kind: output, shape index: {}]
  %s7 = sld [smem:[#allocation0]]
  $region42: #{tpu_custom_call.1} parent=0
    _
  %s9 = ssub.s32 1, %s7
  %s10 = scalar_select 0, %s9, %s7
  $region1: #{tpu_custom_call.1} parent=0
    #allocation2 [shape = 'u8[65536]{0}', space=vmem, size = 0x10000, scoped, tag = 'input window, operand 2, single buffered']
    #allocation3 [shape = 's32[1]{0}', space=sflag, size = 0x4, scoped, tag = 'scoped memory for tpu_custom_call.1']
    #allocation4 [shape = 's32[1]{0}', space=sflag, size = 0x4, scoped, tag = 'scoped memory for tpu_custom_call.1']
    #allocation5 [shape = 'u8[65536]{0}', space=vmem, size = 0x10000, scoped, tag = 'input window, operand 4, single buffered']
    #allocation6 [shape = 's32[1]{0}', space=sflag, size = 0x4, scoped, tag = 'scoped memory for tpu_custom_call.1']
    #allocation7 [shape = 'u8[4096]{0}', space=vmem, size = 0x1000, scoped, tag = 'output window, operand 0, single buffered']
    %11 = vsyncpa [#allocation3], 0
    %12 = vsyncpa [#allocation6], 0
    %13 = vsyncpa [#allocation4], 0
    // Predicated region
    $region2: #{tpu_custom_call.1} parent=1 // pred_check
      _
    $region3: #{tpu_custom_call.1} parent=1 // pred_check_branch
      %15 = sbr.rel (0) target = $region5
    $region4: #{tpu_custom_call.1} parent=1 // pred_region
      _
    $region5: #{tpu_custom_call.1} parent=1 // pred_fallthru
      _
    // Predicated region
    $region6: #{tpu_custom_call.1} parent=1 // pred_check
      _
    $region7: #{tpu_custom_call.1} parent=1 // pred_check_branch
      %17 = sbr.rel (0) target = $region9
    $region8: #{tpu_custom_call.1} parent=1 // pred_region
      _
    $region9: #{tpu_custom_call.1} parent=1 // pred_fallthru
      _
    // Predicated region
    $region10: #{tpu_custom_call.1} parent=1 // pred_check
      _
    $region11: #{tpu_custom_call.1} parent=1 // pred_check_branch
      %19 = sbr.rel (0) target = $region13
    $region12: #{tpu_custom_call.1} parent=1 // pred_region
      %s21 = ssub.s32 2048, 2048
      %22 = vsyncadd [#allocation3], %s21
      %s23 = sshll.u32 [#allocation2], 4
      %s24 = int_to_ptr.vmem [resolvable:$true] %s23
      %29 = dma.hbm_to_vmem [thread:$0]  %s2, 2048, %s24, [#allocation3], 128, 128, 8
    $region13: #{tpu_custom_call.1} parent=1 // pred_fallthru
      _
    // Predicated region
    $region14: #{tpu_custom_call.1} parent=1 // pred_check
      _
    $region15: #{tpu_custom_call.1} parent=1 // pred_check_branch
      %31 = sbr.rel (0) target = $region17
    $region16: #{tpu_custom_call.1} parent=1 // pred_region
      _
    $region17: #{tpu_custom_call.1} parent=1 // pred_fallthru
      _
    // Predicated region
    $region18: #{tpu_custom_call.1} parent=1 // pred_check
      _
    $region19: #{tpu_custom_call.1} parent=1 // pred_check_branch
      %33 = sbr.rel (0) target = $region21
    $region20: #{tpu_custom_call.1} parent=1 // pred_region
      %s35 = ssub.s32 2048, 2048
      %36 = vsyncadd [#allocation6], %s35
      %s37 = sshll.u32 [#allocation5], 4
      %s38 = int_to_ptr.vmem [resolvable:$true] %s37
      %43 = dma.hbm_to_vmem [thread:$0]  %s4, 2048, %s38, [#allocation6], 128, 128, 8
    $region21: #{tpu_custom_call.1} parent=1 // pred_fallthru
      _
    // Predicated region
    $region22: #{tpu_custom_call.1} parent=1 // pred_check
      _
    $region23: #{tpu_custom_call.1} parent=1 // pred_check_branch
      %45 = sbr.rel (0) target = $region25
    $region24: #{tpu_custom_call.1} parent=1 // pred_region
      _
    $region25: #{tpu_custom_call.1} parent=1 // pred_fallthru
      _
    // Predicated region
    $region26: #{tpu_custom_call.1} parent=1 // pred_check
      _
    $region27: #{tpu_custom_call.1} parent=1 // pred_check_branch
      %47 = sbr.rel (0) target = $region29
    $region28: #{tpu_custom_call.1} parent=1 // pred_region
      %48 = dma.done [#allocation3], 2048
    $region29: #{tpu_custom_call.1} parent=1 // pred_fallthru
      _
    // Predicated region
    $region30: #{tpu_custom_call.1} parent=1 // pred_check
      _
    $region31: #{tpu_custom_call.1} parent=1 // pred_check_branch
      %50 = sbr.rel (0) target = $region33
    $region32: #{tpu_custom_call.1} parent=1 // pred_region
      %51 = dma.done [#allocation6], 2048
    $region33: #{tpu_custom_call.1} parent=1 // pred_fallthru
      _
    %v52 = vld [vmem:[%s0] sm:$0xff]
    %v53 = vld [vmem:[%s0 + $0x8] sm:$0xff]
    %v54 = vld [vmem:[%s0 + $0x10] sm:$0xff]
    %v55 = vld [vmem:[%s0 + $0x18] sm:$0xff]
    %v56 = vld [vmem:[%s0 + $0x20] sm:$0xff]
    %v57 = vld [vmem:[%s0 + $0x28] sm:$0xff]
    %v58 = vld [vmem:[%s0 + $0x30] sm:$0xff]
    %v59 = vld [vmem:[%s0 + $0x38] sm:$0xff]
    %v60 = vld [vmem:[%s1] sm:$0xff]
    %v61 = vld [vmem:[%s3] sm:$0x1]
    %v63 = vlaneseq
    %v64 = vshrl.u32 %v63, 7
    %v65 = vsub.s32 0, %v64
    %v66 = vrot.slane %v61, %v65
    %vm68 = vcmask 64512
    %v70 = vsel %vm68, %v52, 0
    %v73 = vsel %vm68, %v53, 0
    %v76 = vsel %vm68, %v54, 0
    %v79 = vsel %vm68, %v55, 0
    %v82 = vsel %vm68, %v56, 0
    %v85 = vsel %vm68, %v57, 0
    %v88 = vsel %vm68, %v58, 0
    %v91 = vsel %vm68, %v59, 0
    %93 = vmatprep.subr.mxu0 0.0
    %94 = vmatpush1.msra.mxu0 0.0
    %95 = vmatprep.subr.mxu0 0.0
    %96 = vmatpush1.msra.mxu0 0.0
    %97 = vmatprep.subr.mxu0 0.0
    %98 = vmatpush1.msra.mxu0 0.0
    %99 = vmatprep.subr.mxu0 0.0
    %100 = vmatpush1.msra.mxu0 0.0
    %101 = vmatprep.subr.mxu0 0.0
    %102 = vmatpush1.msra.mxu0 0.0
    %103 = vmatprep.subr.mxu0 0.0
    %104 = vmatpush1.msra.mxu0 0.0
    %105 = vmatprep.subr.mxu0 0.0
    %106 = vmatpush1.msra.mxu0 0.0
    %107 = vmatprep.subr.mxu0 0.0
    %108 = vmatpush1.msra.mxu0 0.0
    %109 = vmatprep.subr.mxu0 0.0
    %110 = vmatpush1.msra.mxu0 0.0
    %111 = vmatprep.subr.mxu0 0.0
    %112 = vmatpush1.msra.mxu0 0.0
    %113 = vmatprep.subr.mxu0 0.0
    %114 = vmatpush1.msra.mxu0 0.0
    %115 = vmatprep.subr.mxu0 0.0
    %116 = vmatpush1.msra.mxu0 0.0
    %117 = vmatprep.subr.mxu0 0.0
    %118 = vmatpush1.msra.mxu0 0.0
    %119 = vmatprep.subr.mxu0 0.0
    %120 = vmatpush1.msra.mxu0 0.0
    %121 = vmatprep.subr.mxu0 0.0
    %122 = vmatpush1.msra.mxu0 0.0
    %123 = vmatprep.subr.mxu0 0.0
    %124 = vmatpush1.msra.mxu0 %v60
    %125 = vmatprep.subr.mxu0 0.0
    %126 = vmatpush2.msra.mxu0 0.0
    %127 = vmatprep.subr.mxu0 0.0
    %128 = vmatpush2.msra.mxu0 0.0
    %129 = vmatprep.subr.mxu0 0.0
    %130 = vmatpush2.msra.mxu0 0.0
    %131 = vmatprep.subr.mxu0 0.0
    %132 = vmatpush2.msra.mxu0 0.0
    %133 = vmatprep.subr.mxu0 0.0
    %134 = vmatpush2.msra.mxu0 0.0
    %135 = vmatprep.subr.mxu0 0.0
    %136 = vmatpush2.msra.mxu0 0.0
    %137 = vmatprep.subr.mxu0 0.0
    %138 = vmatpush2.msra.mxu0 0.0
    %139 = vmatprep.subr.mxu0 0.0
    %140 = vmatpush2.msra.mxu0 0.0
    %141 = vmatprep.subr.mxu0 0.0
    %142 = vmatpush2.msra.mxu0 0.0
    %143 = vmatprep.subr.mxu0 0.0
    %144 = vmatpush2.msra.mxu0 0.0
    %145 = vmatprep.subr.mxu0 0.0
    %146 = vmatpush2.msra.mxu0 0.0
    %147 = vmatprep.subr.mxu0 0.0
    %148 = vmatpush2.msra.mxu0 0.0
    %149 = vmatprep.subr.mxu0 0.0
    %150 = vmatpush2.msra.mxu0 0.0
    %151 = vmatprep.subr.mxu0 0.0
    %152 = vmatpush2.msra.mxu0 0.0
    %153 = vmatprep.subr.mxu0 0.0
    %154 = vmatpush2.msra.mxu0 0.0
    %155 = vmatprep.subr.mxu0 0.0
    %156 = vmatpush2.msra.mxu0 0.0
    %157 = vmatprep.mubr.f32.mxu0 0.0
    %158 = vmatmul.mubr.f32.gmra.mxu0 %v70
    %v159 = vpop.f32.mrf.mxu0
    %v160 = vadd.f32 %v66, %v159
    %v161 = vpop.f32.mrf.mxu0
    %162 = vmatprep.mubr.f32.mxu0 0.0
    %163 = vmatmul.mubr.f32.gmra.mxu0 %v73
    %v164 = vpop.f32.mrf.mxu0
    %v165 = vadd.f32 %v66, %v164
    %v166 = vpop.f32.mrf.mxu0
    %167 = vmatprep.mubr.f32.mxu0 0.0
    %168 = vmatmul.mubr.f32.gmra.mxu0 %v76
    %v169 = vpop.f32.mrf.mxu0
    %v170 = vadd.f32 %v66, %v169
    %v171 = vpop.f32.mrf.mxu0
    %172 = vmatprep.mubr.f32.mxu0 0.0
    %173 = vmatmul.mubr.f32.gmra.mxu0 %v79
    %v174 = vpop.f32.mrf.mxu0
    %v175 = vadd.f32 %v66, %v174
    %v176 = vpop.f32.mrf.mxu0
    %177 = vmatprep.mubr.f32.mxu0 0.0
    %178 = vmatmul.mubr.f32.gmra.mxu0 %v82
    %v179 = vpop.f32.mrf.mxu0
    %v180 = vadd.f32 %v66, %v179
    %v181 = vpop.f32.mrf.mxu0
    %182 = vmatprep.mubr.f32.mxu0 0.0
    %183 = vmatmul.mubr.f32.gmra.mxu0 %v85
    %v184 = vpop.f32.mrf.mxu0
    %v185 = vadd.f32 %v66, %v184
    %v186 = vpop.f32.mrf.mxu0
    %187 = vmatprep.mubr.f32.mxu0 0.0
    %188 = vmatmul.mubr.f32.gmra.mxu0 %v88
    %v189 = vpop.f32.mrf.mxu0
    %v190 = vadd.f32 %v66, %v189
    %v191 = vpop.f32.mrf.mxu0
    %192 = vmatprep.mubr.f32.mxu0 0.0
    %193 = vmatmul.mubr.f32.gmra.mxu0 %v91
    %v194 = vpop.f32.mrf.mxu0
    %v195 = vadd.f32 %v66, %v194
    %v196 = vpop.f32.mrf.mxu0
    %197 = vdwg.mxu0
    %v198 = vld [vmem:[#allocation2] sm:$0xff]
    %v199 = vld [vmem:[#allocation2 + $0x8] sm:$0xff]
    %v200 = vld [vmem:[#allocation2 + $0x10] sm:$0xff]
    %v201 = vld [vmem:[#allocation2 + $0x18] sm:$0xff]
    %v202 = vld [vmem:[#allocation2 + $0x20] sm:$0xff]
    %v203 = vld [vmem:[#allocation2 + $0x28] sm:$0xff]
    %v204 = vld [vmem:[#allocation2 + $0x30] sm:$0xff]
    %v205 = vld [vmem:[#allocation2 + $0x38] sm:$0xff]
    %v206 = vld [vmem:[#allocation2 + $0x40] sm:$0xff]
    %v207 = vld [vmem:[#allocation2 + $0x48] sm:$0xff]
    %v208 = vld [vmem:[#allocation2 + $0x50] sm:$0xff]
    %v209 = vld [vmem:[#allocation2 + $0x58] sm:$0xff]
    %v210 = vld [vmem:[#allocation2 + $0x60] sm:$0xff]
    %v211 = vld [vmem:[#allocation2 + $0x68] sm:$0xff]
    %v212 = vld [vmem:[#allocation2 + $0x70] sm:$0xff]
    %v213 = vld [vmem:[#allocation2 + $0x78] sm:$0xff]
    %v214 = vlaneseq
    %v215 = vand.u32 %v214, 127
    %vm216 = vcmp.ge.s32.totalorder %v215, 64
    %vm217 = vcmp.lt.s32.totalorder %v215, 96
    %vm218 = vmand %vm216, %vm217
    %v219 = vsel %vm218, 1.0, 0.5
    %v220 = vsel %vm218, 0.0, 0.5
    %221 = vmatprep.subr.mxu0 0.0
    %222 = vmatpush1.msra.mxu0 %v213
    %223 = vmatprep.subr.mxu0 0.0
    %224 = vmatpush1.msra.mxu0 %v212
    %225 = vmatprep.subr.mxu0 0.0
    %226 = vmatpush1.msra.mxu0 %v211
    %227 = vmatprep.subr.mxu0 0.0
    %228 = vmatpush1.msra.mxu0 %v210
    %229 = vmatprep.subr.mxu0 0.0
    %230 = vmatpush1.msra.mxu0 %v209
    %231 = vmatprep.subr.mxu0 0.0
    %232 = vmatpush1.msra.mxu0 %v208
    %233 = vmatprep.subr.mxu0 0.0
    %234 = vmatpush1.msra.mxu0 %v207
    %235 = vmatprep.subr.mxu0 0.0
    %236 = vmatpush1.msra.mxu0 %v206
    %237 = vmatprep.subr.mxu0 0.0
    %238 = vmatpush1.msra.mxu0 %v205
    %239 = vmatprep.subr.mxu0 0.0
    %240 = vmatpush1.msra.mxu0 %v204
    %241 = vmatprep.subr.mxu0 0.0
    %242 = vmatpush1.msra.mxu0 %v203
    %243 = vmatprep.subr.mxu0 0.0
    %244 = vmatpush1.msra.mxu0 %v202
    %245 = vmatprep.subr.mxu0 0.0
    %246 = vmatpush1.msra.mxu0 %v201
    %247 = vmatprep.subr.mxu0 0.0
    %248 = vmatpush1.msra.mxu0 %v200
    %249 = vmatprep.subr.mxu0 0.0
    %250 = vmatpush1.msra.mxu0 %v199
    %251 = vmatprep.subr.mxu0 0.0
    %252 = vmatpush1.msra.mxu0 %v198
    %253 = vmatprep.subr.mxu0 0.0
    %254 = vmatpush2.msra.mxu0 0.0
    %255 = vmatprep.subr.mxu0 0.0
    %256 = vmatpush2.msra.mxu0 0.0
    %257 = vmatprep.subr.mxu0 0.0
    %258 = vmatpush2.msra.mxu0 0.0
    %259 = vmatprep.subr.mxu0 0.0
    %260 = vmatpush2.msra.mxu0 0.0
    %261 = vmatprep.subr.mxu0 0.0
    %262 = vmatpush2.msra.mxu0 0.0
    %263 = vmatprep.subr.mxu0 0.0
    %264 = vmatpush2.msra.mxu0 0.0
    %265 = vmatprep.subr.mxu0 0.0
    %266 = vmatpush2.msra.mxu0 0.0
    %267 = vmatprep.subr.mxu0 0.0
    %268 = vmatpush2.msra.mxu0 0.0
    %269 = vmatprep.subr.mxu0 0.0
    %270 = vmatpush2.msra.mxu0 0.0
    %271 = vmatprep.subr.mxu0 0.0
    %272 = vmatpush2.msra.mxu0 0.0
    %273 = vmatprep.subr.mxu0 0.0
    %274 = vmatpush2.msra.mxu0 0.0
    %275 = vmatprep.subr.mxu0 0.0
    %276 = vmatpush2.msra.mxu0 0.0
    %277 = vmatprep.subr.mxu0 0.0
    %278 = vmatpush2.msra.mxu0 0.0
    %279 = vmatprep.subr.mxu0 0.0
    %280 = vmatpush2.msra.mxu0 0.0
    %281 = vmatprep.subr.mxu0 0.0
    %282 = vmatpush2.msra.mxu0 0.0
    %283 = vmatprep.subr.mxu0 0.0
    %284 = vmatpush2.msra.mxu0 0.0
    %285 = vmatprep.mubr.f32.mxu0 0.0
    %286 = vmatmul.mubr.f32.gmra.mxu0 0.0
    %v287 = vpop.f32.mrf.mxu0
    %v288 = vadd.f32 0.0, %v287
    %v289 = vpop.f32.mrf.mxu0
    %290 = vdwg.mxu0
    %v291 = vadd.f32 %v160, %v288
    %v292 = vmul.f32 %v219, %v291
    %v293 = vtanh.pop %v292
    %v294 = vmul.f32 %v219, %v293
    %v295 = vadd.f32 %v220, %v294
    %296 = vrot.lane.b32.xlu0 %v295, 96
    %v297 = vpop.permute.xlu0 %296
    %298 = vrot.lane.b32.xlu0 %v295, 64
    %v299 = vpop.permute.xlu0 %298
    %300 = vrot.lane.b32.xlu0 %v295, 32
    %v301 = vpop.permute.xlu0 %300
    %v302 = vmul.f32 %v297, 0.0
    %v303 = vmul.f32 %v295, %v299
    %v304 = vadd.f32 %v302, %v303
    %v305 = vtanh.pop %v304
    %v306 = vmul.f32 %v301, %v305
    %307 = vmatprep.subr.mxu0 0.0
    %308 = vmatpush1.msra.mxu0 %v213
    %309 = vmatprep.subr.mxu0 0.0
    %310 = vmatpush1.msra.mxu0 %v212
    %311 = vmatprep.subr.mxu0 0.0
    %312 = vmatpush1.msra.mxu0 %v211
    %313 = vmatprep.subr.mxu0 0.0
    %314 = vmatpush1.msra.mxu0 %v210
    %315 = vmatprep.subr.mxu0 0.0
    %316 = vmatpush1.msra.mxu0 %v209
    %317 = vmatprep.subr.mxu0 0.0
    %318 = vmatpush1.msra.mxu0 %v208
    %319 = vmatprep.subr.mxu0 0.0
    %320 = vmatpush1.msra.mxu0 %v207
    %321 = vmatprep.subr.mxu0 0.0
    %322 = vmatpush1.msra.mxu0 %v206
    %323 = vmatprep.subr.mxu0 0.0
    %324 = vmatpush1.msra.mxu0 %v205
    %325 = vmatprep.subr.mxu0 0.0
    %326 = vmatpush1.msra.mxu0 %v204
    %327 = vmatprep.subr.mxu0 0.0
    %328 = vmatpush1.msra.mxu0 %v203
    %329 = vmatprep.subr.mxu0 0.0
    %330 = vmatpush1.msra.mxu0 %v202
    %331 = vmatprep.subr.mxu0 0.0
    %332 = vmatpush1.msra.mxu0 %v201
    %333 = vmatprep.subr.mxu0 0.0
    %334 = vmatpush1.msra.mxu0 %v200
    %335 = vmatprep.subr.mxu0 0.0
    %336 = vmatpush1.msra.mxu0 %v199
    %337 = vmatprep.subr.mxu0 0.0
    %338 = vmatpush1.msra.mxu0 %v198
    %339 = vmatprep.subr.mxu0 0.0
    %340 = vmatpush2.msra.mxu0 0.0
    %341 = vmatprep.subr.mxu0 0.0
    %342 = vmatpush2.msra.mxu0 0.0
    %343 = vmatprep.subr.mxu0 0.0
    %344 = vmatpush2.msra.mxu0 0.0
    %345 = vmatprep.subr.mxu0 0.0
    %346 = vmatpush2.msra.mxu0 0.0
    %347 = vmatprep.subr.mxu0 0.0
    %348 = vmatpush2.msra.mxu0 0.0
    %349 = vmatprep.subr.mxu0 0.0
    %350 = vmatpush2.msra.mxu0 0.0
    %351 = vmatprep.subr.mxu0 0.0
    %352 = vmatpush2.msra.mxu0 0.0
    %353 = vmatprep.subr.mxu0 0.0
    %354 = vmatpush2.msra.mxu0 0.0
    %355 = vmatprep.subr.mxu0 0.0
    %356 = vmatpush2.msra.mxu0 0.0
    %357 = vmatprep.subr.mxu0 0.0
    %358 = vmatpush2.msra.mxu0 0.0
    %359 = vmatprep.subr.mxu0 0.0
    %360 = vmatpush2.msra.mxu0 0.0
    %361 = vmatprep.subr.mxu0 0.0
    %362 = vmatpush2.msra.mxu0 0.0
    %363 = vmatprep.subr.mxu0 0.0
    %364 = vmatpush2.msra.mxu0 0.0
    %365 = vmatprep.subr.mxu0 0.0
    %366 = vmatpush2.msra.mxu0 0.0
    %367 = vmatprep.subr.mxu0 0.0
    %368 = vmatpush2.msra.mxu0 0.0
    %369 = vmatprep.subr.mxu0 0.0
    %370 = vmatpush2.msra.mxu0 0.0
    %371 = vmatprep.mubr.f32.mxu0 0.0
    %372 = vmatmul.mubr.f32.gmra.mxu0 %v306
    %v373 = vpop.f32.mrf.mxu0
    %v374 = vadd.f32 0.0, %v373
    %v375 = vpop.f32.mrf.mxu0
    %376 = vdwg.mxu0
    %v377 = vadd.f32 %v165, %v374
    %v378 = vmul.f32 %v219, %v377
    %v379 = vtanh.pop %v378
    %v380 = vmul.f32 %v219, %v379
    %v381 = vadd.f32 %v220, %v380
    %382 = vrot.lane.b32.xlu0 %v381, 96
    %v383 = vpop.permute.xlu0 %382
    %384 = vrot.lane.b32.xlu0 %v381, 64
    %v385 = vpop.permute.xlu0 %384
    %386 = vrot.lane.b32.xlu0 %v381, 32
    %v387 = vpop.permute.xlu0 %386
    %v388 = vmul.f32 %v383, %v304
    %v389 = vmul.f32 %v381, %v385
    %v390 = vadd.f32 %v388, %v389
    %v391 = vtanh.pop %v390
    %v392 = vmul.f32 %v387, %v391
    %393 = vmatprep.subr.mxu0 0.0
    %394 = vmatpush1.msra.mxu0 %v213
    %395 = vmatprep.subr.mxu0 0.0
    %396 = vmatpush1.msra.mxu0 %v212
    %397 = vmatprep.subr.mxu0 0.0
    %398 = vmatpush1.msra.mxu0 %v211
    %399 = vmatprep.subr.mxu0 0.0
    %400 = vmatpush1.msra.mxu0 %v210
    %401 = vmatprep.subr.mxu0 0.0
    %402 = vmatpush1.msra.mxu0 %v209
    %403 = vmatprep.subr.mxu0 0.0
    %404 = vmatpush1.msra.mxu0 %v208
    %405 = vmatprep.subr.mxu0 0.0
    %406 = vmatpush1.msra.mxu0 %v207
    %407 = vmatprep.subr.mxu0 0.0
    %408 = vmatpush1.msra.mxu0 %v206
    %409 = vmatprep.subr.mxu0 0.0
    %410 = vmatpush1.msra.mxu0 %v205
    %411 = vmatprep.subr.mxu0 0.0
    %412 = vmatpush1.msra.mxu0 %v204
    %413 = vmatprep.subr.mxu0 0.0
    %414 = vmatpush1.msra.mxu0 %v203
    %415 = vmatprep.subr.mxu0 0.0
    %416 = vmatpush1.msra.mxu0 %v202
    %417 = vmatprep.subr.mxu0 0.0
    %418 = vmatpush1.msra.mxu0 %v201
    %419 = vmatprep.subr.mxu0 0.0
    %420 = vmatpush1.msra.mxu0 %v200
    %421 = vmatprep.subr.mxu0 0.0
    %422 = vmatpush1.msra.mxu0 %v199
    %423 = vmatprep.subr.mxu0 0.0
    %424 = vmatpush1.msra.mxu0 %v198
    %425 = vmatprep.subr.mxu0 0.0
    %426 = vmatpush2.msra.mxu0 0.0
    %427 = vmatprep.subr.mxu0 0.0
    %428 = vmatpush2.msra.mxu0 0.0
    %429 = vmatprep.subr.mxu0 0.0
    %430 = vmatpush2.msra.mxu0 0.0
    %431 = vmatprep.subr.mxu0 0.0
    %432 = vmatpush2.msra.mxu0 0.0
    %433 = vmatprep.subr.mxu0 0.0
    %434 = vmatpush2.msra.mxu0 0.0
    %435 = vmatprep.subr.mxu0 0.0
    %436 = vmatpush2.msra.mxu0 0.0
    %437 = vmatprep.subr.mxu0 0.0
    %438 = vmatpush2.msra.mxu0 0.0
    %439 = vmatprep.subr.mxu0 0.0
    %440 = vmatpush2.msra.mxu0 0.0
    %441 = vmatprep.subr.mxu0 0.0
    %442 = vmatpush2.msra.mxu0 0.0
    %443 = vmatprep.subr.mxu0 0.0
    %444 = vmatpush2.msra.mxu0 0.0
    %445 = vmatprep.subr.mxu0 0.0
    %446 = vmatpush2.msra.mxu0 0.0
    %447 = vmatprep.subr.mxu0 0.0
    %448 = vmatpush2.msra.mxu0 0.0
    %449 = vmatprep.subr.mxu0 0.0
    %450 = vmatpush2.msra.mxu0 0.0
    %451 = vmatprep.subr.mxu0 0.0
    %452 = vmatpush2.msra.mxu0 0.0
    %453 = vmatprep.subr.mxu0 0.0
    %454 = vmatpush2.msra.mxu0 0.0
    %455 = vmatprep.subr.mxu0 0.0
    %456 = vmatpush2.msra.mxu0 0.0
    %457 = vmatprep.mubr.f32.mxu0 0.0
    %458 = vmatmul.mubr.f32.gmra.mxu0 %v392
    %v459 = vpop.f32.mrf.mxu0
    %v460 = vadd.f32 0.0, %v459
    %v461 = vpop.f32.mrf.mxu0
    %462 = vdwg.mxu0
    %v463 = vadd.f32 %v170, %v460
    %v464 = vmul.f32 %v219, %v463
    %v465 = vtanh.pop %v464
    %v466 = vmul.f32 %v219, %v465
    %v467 = vadd.f32 %v220, %v466
    %468 = vrot.lane.b32.xlu0 %v467, 96
    %v469 = vpop.permute.xlu0 %468
    %470 = vrot.lane.b32.xlu0 %v467, 64
    %v471 = vpop.permute.xlu0 %470
    %472 = vrot.lane.b32.xlu0 %v467, 32
    %v473 = vpop.permute.xlu0 %472
    %v474 = vmul.f32 %v469, %v390
    %v475 = vmul.f32 %v467, %v471
    %v476 = vadd.f32 %v474, %v475
    %v477 = vtanh.pop %v476
    %v478 = vmul.f32 %v473, %v477
    %479 = vmatprep.subr.mxu0 0.0
    %480 = vmatpush1.msra.mxu0 %v213
    %481 = vmatprep.subr.mxu0 0.0
    %482 = vmatpush1.msra.mxu0 %v212
    %483 = vmatprep.subr.mxu0 0.0
    %484 = vmatpush1.msra.mxu0 %v211
    %485 = vmatprep.subr.mxu0 0.0
    %486 = vmatpush1.msra.mxu0 %v210
    %487 = vmatprep.subr.mxu0 0.0
    %488 = vmatpush1.msra.mxu0 %v209
    %489 = vmatprep.subr.mxu0 0.0
    %490 = vmatpush1.msra.mxu0 %v208
    %491 = vmatprep.subr.mxu0 0.0
    %492 = vmatpush1.msra.mxu0 %v207
    %493 = vmatprep.subr.mxu0 0.0
    %494 = vmatpush1.msra.mxu0 %v206
    %495 = vmatprep.subr.mxu0 0.0
    %496 = vmatpush1.msra.mxu0 %v205
    %497 = vmatprep.subr.mxu0 0.0
    %498 = vmatpush1.msra.mxu0 %v204
    %499 = vmatprep.subr.mxu0 0.0
    %500 = vmatpush1.msra.mxu0 %v203
    %501 = vmatprep.subr.mxu0 0.0
    %502 = vmatpush1.msra.mxu0 %v202
    %503 = vmatprep.subr.mxu0 0.0
    %504 = vmatpush1.msra.mxu0 %v201
    %505 = vmatprep.subr.mxu0 0.0
    %506 = vmatpush1.msra.mxu0 %v200
    %507 = vmatprep.subr.mxu0 0.0
    %508 = vmatpush1.msra.mxu0 %v199
    %509 = vmatprep.subr.mxu0 0.0
    %510 = vmatpush1.msra.mxu0 %v198
    %511 = vmatprep.subr.mxu0 0.0
    %512 = vmatpush2.msra.mxu0 0.0
    %513 = vmatprep.subr.mxu0 0.0
    %514 = vmatpush2.msra.mxu0 0.0
    %515 = vmatprep.subr.mxu0 0.0
    %516 = vmatpush2.msra.mxu0 0.0
    %517 = vmatprep.subr.mxu0 0.0
    %518 = vmatpush2.msra.mxu0 0.0
    %519 = vmatprep.subr.mxu0 0.0
    %520 = vmatpush2.msra.mxu0 0.0
    %521 = vmatprep.subr.mxu0 0.0
    %522 = vmatpush2.msra.mxu0 0.0
    %523 = vmatprep.subr.mxu0 0.0
    %524 = vmatpush2.msra.mxu0 0.0
    %525 = vmatprep.subr.mxu0 0.0
    %526 = vmatpush2.msra.mxu0 0.0
    %527 = vmatprep.subr.mxu0 0.0
    %528 = vmatpush2.msra.mxu0 0.0
    %529 = vmatprep.subr.mxu0 0.0
    %530 = vmatpush2.msra.mxu0 0.0
    %531 = vmatprep.subr.mxu0 0.0
    %532 = vmatpush2.msra.mxu0 0.0
    %533 = vmatprep.subr.mxu0 0.0
    %534 = vmatpush2.msra.mxu0 0.0
    %535 = vmatprep.subr.mxu0 0.0
    %536 = vmatpush2.msra.mxu0 0.0
    %537 = vmatprep.subr.mxu0 0.0
    %538 = vmatpush2.msra.mxu0 0.0
    %539 = vmatprep.subr.mxu0 0.0
    %540 = vmatpush2.msra.mxu0 0.0
    %541 = vmatprep.subr.mxu0 0.0
    %542 = vmatpush2.msra.mxu0 0.0
    %543 = vmatprep.mubr.f32.mxu0 0.0
    %544 = vmatmul.mubr.f32.gmra.mxu0 %v478
    %v545 = vpop.f32.mrf.mxu0
    %v546 = vadd.f32 0.0, %v545
    %v547 = vpop.f32.mrf.mxu0
    %548 = vdwg.mxu0
    %v549 = vadd.f32 %v175, %v546
    %v550 = vmul.f32 %v219, %v549
    %v551 = vtanh.pop %v550
    %v552 = vmul.f32 %v219, %v551
    %v553 = vadd.f32 %v220, %v552
    %554 = vrot.lane.b32.xlu0 %v553, 96
    %v555 = vpop.permute.xlu0 %554
    %556 = vrot.lane.b32.xlu0 %v553, 64
    %v557 = vpop.permute.xlu0 %556
    %558 = vrot.lane.b32.xlu0 %v553, 32
    %v559 = vpop.permute.xlu0 %558
    %v560 = vmul.f32 %v555, %v476
    %v561 = vmul.f32 %v553, %v557
    %v562 = vadd.f32 %v560, %v561
    %v563 = vtanh.pop %v562
    %v564 = vmul.f32 %v559, %v563
    %565 = vmatprep.subr.mxu0 0.0
    %566 = vmatpush1.msra.mxu0 %v213
    %567 = vmatprep.subr.mxu0 0.0
    %568 = vmatpush1.msra.mxu0 %v212
    %569 = vmatprep.subr.mxu0 0.0
    %570 = vmatpush1.msra.mxu0 %v211
    %571 = vmatprep.subr.mxu0 0.0
    %572 = vmatpush1.msra.mxu0 %v210
    %573 = vmatprep.subr.mxu0 0.0
    %574 = vmatpush1.msra.mxu0 %v209
    %575 = vmatprep.subr.mxu0 0.0
    %576 = vmatpush1.msra.mxu0 %v208
    %577 = vmatprep.subr.mxu0 0.0
    %578 = vmatpush1.msra.mxu0 %v207
    %579 = vmatprep.subr.mxu0 0.0
    %580 = vmatpush1.msra.mxu0 %v206
    %581 = vmatprep.subr.mxu0 0.0
    %582 = vmatpush1.msra.mxu0 %v205
    %583 = vmatprep.subr.mxu0 0.0
    %584 = vmatpush1.msra.mxu0 %v204
    %585 = vmatprep.subr.mxu0 0.0
    %586 = vmatpush1.msra.mxu0 %v203
    %587 = vmatprep.subr.mxu0 0.0
    %588 = vmatpush1.msra.mxu0 %v202
    %589 = vmatprep.subr.mxu0 0.0
    %590 = vmatpush1.msra.mxu0 %v201
    %591 = vmatprep.subr.mxu0 0.0
    %592 = vmatpush1.msra.mxu0 %v200
    %593 = vmatprep.subr.mxu0 0.0
    %594 = vmatpush1.msra.mxu0 %v199
    %595 = vmatprep.subr.mxu0 0.0
    %596 = vmatpush1.msra.mxu0 %v198
    %597 = vmatprep.subr.mxu0 0.0
    %598 = vmatpush2.msra.mxu0 0.0
    %599 = vmatprep.subr.mxu0 0.0
    %600 = vmatpush2.msra.mxu0 0.0
    %601 = vmatprep.subr.mxu0 0.0
    %602 = vmatpush2.msra.mxu0 0.0
    %603 = vmatprep.subr.mxu0 0.0
    %604 = vmatpush2.msra.mxu0 0.0
    %605 = vmatprep.subr.mxu0 0.0
    %606 = vmatpush2.msra.mxu0 0.0
    %607 = vmatprep.subr.mxu0 0.0
    %608 = vmatpush2.msra.mxu0 0.0
    %609 = vmatprep.subr.mxu0 0.0
    %610 = vmatpush2.msra.mxu0 0.0
    %611 = vmatprep.subr.mxu0 0.0
    %612 = vmatpush2.msra.mxu0 0.0
    %613 = vmatprep.subr.mxu0 0.0
    %614 = vmatpush2.msra.mxu0 0.0
    %615 = vmatprep.subr.mxu0 0.0
    %616 = vmatpush2.msra.mxu0 0.0
    %617 = vmatprep.subr.mxu0 0.0
    %618 = vmatpush2.msra.mxu0 0.0
    %619 = vmatprep.subr.mxu0 0.0
    %620 = vmatpush2.msra.mxu0 0.0
    %621 = vmatprep.subr.mxu0 0.0
    %622 = vmatpush2.msra.mxu0 0.0
    %623 = vmatprep.subr.mxu0 0.0
    %624 = vmatpush2.msra.mxu0 0.0
    %625 = vmatprep.subr.mxu0 0.0
    %626 = vmatpush2.msra.mxu0 0.0
    %627 = vmatprep.subr.mxu0 0.0
    %628 = vmatpush2.msra.mxu0 0.0
    %629 = vmatprep.mubr.f32.mxu0 0.0
    %630 = vmatmul.mubr.f32.gmra.mxu0 %v564
    %v631 = vpop.f32.mrf.mxu0
    %v632 = vadd.f32 0.0, %v631
    %v633 = vpop.f32.mrf.mxu0
    %634 = vdwg.mxu0
    %v635 = vadd.f32 %v180, %v632
    %v636 = vmul.f32 %v219, %v635
    %v637 = vtanh.pop %v636
    %v638 = vmul.f32 %v219, %v637
    %v639 = vadd.f32 %v220, %v638
    %640 = vrot.lane.b32.xlu0 %v639, 96
    %v641 = vpop.permute.xlu0 %640
    %642 = vrot.lane.b32.xlu0 %v639, 64
    %v643 = vpop.permute.xlu0 %642
    %644 = vrot.lane.b32.xlu0 %v639, 32
    %v645 = vpop.permute.xlu0 %644
    %v646 = vmul.f32 %v641, %v562
    %v647 = vmul.f32 %v639, %v643
    %v648 = vadd.f32 %v646, %v647
    %v649 = vtanh.pop %v648
    %v650 = vmul.f32 %v645, %v649
    %651 = vmatprep.subr.mxu0 0.0
    %652 = vmatpush1.msra.mxu0 %v213
    %653 = vmatprep.subr.mxu0 0.0
    %654 = vmatpush1.msra.mxu0 %v212
    %655 = vmatprep.subr.mxu0 0.0
    %656 = vmatpush1.msra.mxu0 %v211
    %657 = vmatprep.subr.mxu0 0.0
    %658 = vmatpush1.msra.mxu0 %v210
    %659 = vmatprep.subr.mxu0 0.0
    %660 = vmatpush1.msra.mxu0 %v209
    %661 = vmatprep.subr.mxu0 0.0
    %662 = vmatpush1.msra.mxu0 %v208
    %663 = vmatprep.subr.mxu0 0.0
    %664 = vmatpush1.msra.mxu0 %v207
    %665 = vmatprep.subr.mxu0 0.0
    %666 = vmatpush1.msra.mxu0 %v206
    %667 = vmatprep.subr.mxu0 0.0
    %668 = vmatpush1.msra.mxu0 %v205
    %669 = vmatprep.subr.mxu0 0.0
    %670 = vmatpush1.msra.mxu0 %v204
    %671 = vmatprep.subr.mxu0 0.0
    %672 = vmatpush1.msra.mxu0 %v203
    %673 = vmatprep.subr.mxu0 0.0
    %674 = vmatpush1.msra.mxu0 %v202
    %675 = vmatprep.subr.mxu0 0.0
    %676 = vmatpush1.msra.mxu0 %v201
    %677 = vmatprep.subr.mxu0 0.0
    %678 = vmatpush1.msra.mxu0 %v200
    %679 = vmatprep.subr.mxu0 0.0
    %680 = vmatpush1.msra.mxu0 %v199
    %681 = vmatprep.subr.mxu0 0.0
    %682 = vmatpush1.msra.mxu0 %v198
    %683 = vmatprep.subr.mxu0 0.0
    %684 = vmatpush2.msra.mxu0 0.0
    %685 = vmatprep.subr.mxu0 0.0
    %686 = vmatpush2.msra.mxu0 0.0
    %687 = vmatprep.subr.mxu0 0.0
    %688 = vmatpush2.msra.mxu0 0.0
    %689 = vmatprep.subr.mxu0 0.0
    %690 = vmatpush2.msra.mxu0 0.0
    %691 = vmatprep.subr.mxu0 0.0
    %692 = vmatpush2.msra.mxu0 0.0
    %693 = vmatprep.subr.mxu0 0.0
    %694 = vmatpush2.msra.mxu0 0.0
    %695 = vmatprep.subr.mxu0 0.0
    %696 = vmatpush2.msra.mxu0 0.0
    %697 = vmatprep.subr.mxu0 0.0
    %698 = vmatpush2.msra.mxu0 0.0
    %699 = vmatprep.subr.mxu0 0.0
    %700 = vmatpush2.msra.mxu0 0.0
    %701 = vmatprep.subr.mxu0 0.0
    %702 = vmatpush2.msra.mxu0 0.0
    %703 = vmatprep.subr.mxu0 0.0
    %704 = vmatpush2.msra.mxu0 0.0
    %705 = vmatprep.subr.mxu0 0.0
    %706 = vmatpush2.msra.mxu0 0.0
    %707 = vmatprep.subr.mxu0 0.0
    %708 = vmatpush2.msra.mxu0 0.0
    %709 = vmatprep.subr.mxu0 0.0
    %710 = vmatpush2.msra.mxu0 0.0
    %711 = vmatprep.subr.mxu0 0.0
    %712 = vmatpush2.msra.mxu0 0.0
    %713 = vmatprep.subr.mxu0 0.0
    %714 = vmatpush2.msra.mxu0 0.0
    %715 = vmatprep.mubr.f32.mxu0 0.0
    %716 = vmatmul.mubr.f32.gmra.mxu0 %v650
    %v717 = vpop.f32.mrf.mxu0
    %v718 = vadd.f32 0.0, %v717
    %v719 = vpop.f32.mrf.mxu0
    %720 = vdwg.mxu0
    %v721 = vadd.f32 %v185, %v718
    %v722 = vmul.f32 %v219, %v721
    %v723 = vtanh.pop %v722
    %v724 = vmul.f32 %v219, %v723
    %v725 = vadd.f32 %v220, %v724
    %726 = vrot.lane.b32.xlu0 %v725, 96
    %v727 = vpop.permute.xlu0 %726
    %728 = vrot.lane.b32.xlu0 %v725, 64
    %v729 = vpop.permute.xlu0 %728
    %730 = vrot.lane.b32.xlu0 %v725, 32
    %v731 = vpop.permute.xlu0 %730
    %v732 = vmul.f32 %v727, %v648
    %v733 = vmul.f32 %v725, %v729
    %v734 = vadd.f32 %v732, %v733
    %v735 = vtanh.pop %v734
    %v736 = vmul.f32 %v731, %v735
    %737 = vmatprep.subr.mxu0 0.0
    %738 = vmatpush1.msra.mxu0 %v213
    %739 = vmatprep.subr.mxu0 0.0
    %740 = vmatpush1.msra.mxu0 %v212
    %741 = vmatprep.subr.mxu0 0.0
    %742 = vmatpush1.msra.mxu0 %v211
    %743 = vmatprep.subr.mxu0 0.0
    %744 = vmatpush1.msra.mxu0 %v210
    %745 = vmatprep.subr.mxu0 0.0
    %746 = vmatpush1.msra.mxu0 %v209
    %747 = vmatprep.subr.mxu0 0.0
    %748 = vmatpush1.msra.mxu0 %v208
    %749 = vmatprep.subr.mxu0 0.0
    %750 = vmatpush1.msra.mxu0 %v207
    %751 = vmatprep.subr.mxu0 0.0
    %752 = vmatpush1.msra.mxu0 %v206
    %753 = vmatprep.subr.mxu0 0.0
    %754 = vmatpush1.msra.mxu0 %v205
    %755 = vmatprep.subr.mxu0 0.0
    %756 = vmatpush1.msra.mxu0 %v204
    %757 = vmatprep.subr.mxu0 0.0
    %758 = vmatpush1.msra.mxu0 %v203
    %759 = vmatprep.subr.mxu0 0.0
    %760 = vmatpush1.msra.mxu0 %v202
    %761 = vmatprep.subr.mxu0 0.0
    %762 = vmatpush1.msra.mxu0 %v201
    %763 = vmatprep.subr.mxu0 0.0
    %764 = vmatpush1.msra.mxu0 %v200
    %765 = vmatprep.subr.mxu0 0.0
    %766 = vmatpush1.msra.mxu0 %v199
    %767 = vmatprep.subr.mxu0 0.0
    %768 = vmatpush1.msra.mxu0 %v198
    %769 = vmatprep.subr.mxu0 0.0
    %770 = vmatpush2.msra.mxu0 0.0
    %771 = vmatprep.subr.mxu0 0.0
    %772 = vmatpush2.msra.mxu0 0.0
    %773 = vmatprep.subr.mxu0 0.0
    %774 = vmatpush2.msra.mxu0 0.0
    %775 = vmatprep.subr.mxu0 0.0
    %776 = vmatpush2.msra.mxu0 0.0
    %777 = vmatprep.subr.mxu0 0.0
    %778 = vmatpush2.msra.mxu0 0.0
    %779 = vmatprep.subr.mxu0 0.0
    %780 = vmatpush2.msra.mxu0 0.0
    %781 = vmatprep.subr.mxu0 0.0
    %782 = vmatpush2.msra.mxu0 0.0
    %783 = vmatprep.subr.mxu0 0.0
    %784 = vmatpush2.msra.mxu0 0.0
    %785 = vmatprep.subr.mxu0 0.0
    %786 = vmatpush2.msra.mxu0 0.0
    %787 = vmatprep.subr.mxu0 0.0
    %788 = vmatpush2.msra.mxu0 0.0
    %789 = vmatprep.subr.mxu0 0.0
    %790 = vmatpush2.msra.mxu0 0.0
    %791 = vmatprep.subr.mxu0 0.0
    %792 = vmatpush2.msra.mxu0 0.0
    %793 = vmatprep.subr.mxu0 0.0
    %794 = vmatpush2.msra.mxu0 0.0
    %795 = vmatprep.subr.mxu0 0.0
    %796 = vmatpush2.msra.mxu0 0.0
    %797 = vmatprep.subr.mxu0 0.0
    %798 = vmatpush2.msra.mxu0 0.0
    %799 = vmatprep.subr.mxu0 0.0
    %800 = vmatpush2.msra.mxu0 0.0
    %801 = vmatprep.mubr.f32.mxu0 0.0
    %802 = vmatmul.mubr.f32.gmra.mxu0 %v736
    %v803 = vpop.f32.mrf.mxu0
    %v804 = vadd.f32 0.0, %v803
    %v805 = vpop.f32.mrf.mxu0
    %806 = vdwg.mxu0
    %v807 = vadd.f32 %v190, %v804
    %v808 = vmul.f32 %v219, %v807
    %v809 = vtanh.pop %v808
    %v810 = vmul.f32 %v219, %v809
    %v811 = vadd.f32 %v220, %v810
    %812 = vrot.lane.b32.xlu0 %v811, 96
    %v813 = vpop.permute.xlu0 %812
    %814 = vrot.lane.b32.xlu0 %v811, 64
    %v815 = vpop.permute.xlu0 %814
    %816 = vrot.lane.b32.xlu0 %v811, 32
    %v817 = vpop.permute.xlu0 %816
    %v818 = vmul.f32 %v813, %v734
    %v819 = vmul.f32 %v811, %v815
    %v820 = vadd.f32 %v818, %v819
    %v821 = vtanh.pop %v820
    %v822 = vmul.f32 %v817, %v821
    %823 = vmatprep.subr.mxu0 0.0
    %824 = vmatpush1.msra.mxu0 %v213
    %825 = vmatprep.subr.mxu0 0.0
    %826 = vmatpush1.msra.mxu0 %v212
    %827 = vmatprep.subr.mxu0 0.0
    %828 = vmatpush1.msra.mxu0 %v211
    %829 = vmatprep.subr.mxu0 0.0
    %830 = vmatpush1.msra.mxu0 %v210
    %831 = vmatprep.subr.mxu0 0.0
    %832 = vmatpush1.msra.mxu0 %v209
    %833 = vmatprep.subr.mxu0 0.0
    %834 = vmatpush1.msra.mxu0 %v208
    %835 = vmatprep.subr.mxu0 0.0
    %836 = vmatpush1.msra.mxu0 %v207
    %837 = vmatprep.subr.mxu0 0.0
    %838 = vmatpush1.msra.mxu0 %v206
    %839 = vmatprep.subr.mxu0 0.0
    %840 = vmatpush1.msra.mxu0 %v205
    %841 = vmatprep.subr.mxu0 0.0
    %842 = vmatpush1.msra.mxu0 %v204
    %843 = vmatprep.subr.mxu0 0.0
    %844 = vmatpush1.msra.mxu0 %v203
    %845 = vmatprep.subr.mxu0 0.0
    %846 = vmatpush1.msra.mxu0 %v202
    %847 = vmatprep.subr.mxu0 0.0
    %848 = vmatpush1.msra.mxu0 %v201
    %849 = vmatprep.subr.mxu0 0.0
    %850 = vmatpush1.msra.mxu0 %v200
    %851 = vmatprep.subr.mxu0 0.0
    %852 = vmatpush1.msra.mxu0 %v199
    %853 = vmatprep.subr.mxu0 0.0
    %854 = vmatpush1.msra.mxu0 %v198
    %855 = vmatprep.subr.mxu0 0.0
    %856 = vmatpush2.msra.mxu0 0.0
    %857 = vmatprep.subr.mxu0 0.0
    %858 = vmatpush2.msra.mxu0 0.0
    %859 = vmatprep.subr.mxu0 0.0
    %860 = vmatpush2.msra.mxu0 0.0
    %861 = vmatprep.subr.mxu0 0.0
    %862 = vmatpush2.msra.mxu0 0.0
    %863 = vmatprep.subr.mxu0 0.0
    %864 = vmatpush2.msra.mxu0 0.0
    %865 = vmatprep.subr.mxu0 0.0
    %866 = vmatpush2.msra.mxu0 0.0
    %867 = vmatprep.subr.mxu0 0.0
    %868 = vmatpush2.msra.mxu0 0.0
    %869 = vmatprep.subr.mxu0 0.0
    %870 = vmatpush2.msra.mxu0 0.0
    %871 = vmatprep.subr.mxu0 0.0
    %872 = vmatpush2.msra.mxu0 0.0
    %873 = vmatprep.subr.mxu0 0.0
    %874 = vmatpush2.msra.mxu0 0.0
    %875 = vmatprep.subr.mxu0 0.0
    %876 = vmatpush2.msra.mxu0 0.0
    %877 = vmatprep.subr.mxu0 0.0
    %878 = vmatpush2.msra.mxu0 0.0
    %879 = vmatprep.subr.mxu0 0.0
    %880 = vmatpush2.msra.mxu0 0.0
    %881 = vmatprep.subr.mxu0 0.0
    %882 = vmatpush2.msra.mxu0 0.0
    %883 = vmatprep.subr.mxu0 0.0
    %884 = vmatpush2.msra.mxu0 0.0
    %885 = vmatprep.subr.mxu0 0.0
    %886 = vmatpush2.msra.mxu0 0.0
    %887 = vmatprep.mubr.f32.mxu0 0.0
    %888 = vmatmul.mubr.f32.gmra.mxu0 %v822
    %v889 = vpop.f32.mrf.mxu0
    %v890 = vadd.f32 0.0, %v889
    %v891 = vpop.f32.mrf.mxu0
    %892 = vdwg.mxu0
    %v893 = vadd.f32 %v195, %v890
    %v894 = vmul.f32 %v219, %v893
    %v895 = vtanh.pop %v894
    %v896 = vmul.f32 %v219, %v895
    %v897 = vadd.f32 %v220, %v896
    %898 = vrot.lane.b32.xlu0 %v897, 96
    %v899 = vpop.permute.xlu0 %898
    %900 = vrot.lane.b32.xlu0 %v897, 64
    %v901 = vpop.permute.xlu0 %900
    %902 = vrot.lane.b32.xlu0 %v897, 32
    %v903 = vpop.permute.xlu0 %902
    %v904 = vmul.f32 %v899, %v820
    %v905 = vmul.f32 %v897, %v901
    %v906 = vadd.f32 %v904, %v905
    %v907 = vtanh.pop %v906
    %v908 = vmul.f32 %v903, %v907
    %v909 = vld [vmem:[#allocation5] sm:$0xff]
    %v910 = vld [vmem:[#allocation5 + $0x8] sm:$0xff]
    %v911 = vld [vmem:[#allocation5 + $0x10] sm:$0xff]
    %v912 = vld [vmem:[#allocation5 + $0x18] sm:$0xff]
    %v913 = vld [vmem:[#allocation5 + $0x20] sm:$0xff]
    %v914 = vld [vmem:[#allocation5 + $0x28] sm:$0xff]
    %v915 = vld [vmem:[#allocation5 + $0x30] sm:$0xff]
    %v916 = vld [vmem:[#allocation5 + $0x38] sm:$0xff]
    %v917 = vld [vmem:[#allocation5 + $0x40] sm:$0xff]
    %v918 = vld [vmem:[#allocation5 + $0x48] sm:$0xff]
    %v919 = vld [vmem:[#allocation5 + $0x50] sm:$0xff]
    %v920 = vld [vmem:[#allocation5 + $0x58] sm:$0xff]
    %v921 = vld [vmem:[#allocation5 + $0x60] sm:$0xff]
    %v922 = vld [vmem:[#allocation5 + $0x68] sm:$0xff]
    %v923 = vld [vmem:[#allocation5 + $0x70] sm:$0xff]
    %v924 = vld [vmem:[#allocation5 + $0x78] sm:$0xff]
    %v925 = vld [vmem:[%s5] sm:$0x1]
    %v927 = vlaneseq
    %v928 = vshrl.u32 %v927, 7
    %v929 = vsub.s32 0, %v928
    %v930 = vrot.slane %v925, %v929
    %932 = vmatprep.subr.mxu0 0.0
    %933 = vmatpush1.msra.mxu0 %v924
    %934 = vmatprep.subr.mxu0 0.0
    %935 = vmatpush1.msra.mxu0 %v923
    %936 = vmatprep.subr.mxu0 0.0
    %937 = vmatpush1.msra.mxu0 %v922
    %938 = vmatprep.subr.mxu0 0.0
    %939 = vmatpush1.msra.mxu0 %v921
    %940 = vmatprep.subr.mxu0 0.0
    %941 = vmatpush1.msra.mxu0 %v920
    %942 = vmatprep.subr.mxu0 0.0
    %943 = vmatpush1.msra.mxu0 %v919
    %944 = vmatprep.subr.mxu0 0.0
    %945 = vmatpush1.msra.mxu0 %v918
    %946 = vmatprep.subr.mxu0 0.0
    %947 = vmatpush1.msra.mxu0 %v917
    %948 = vmatprep.subr.mxu0 0.0
    %949 = vmatpush1.msra.mxu0 %v916
    %950 = vmatprep.subr.mxu0 0.0
    %951 = vmatpush1.msra.mxu0 %v915
    %952 = vmatprep.subr.mxu0 0.0
    %953 = vmatpush1.msra.mxu0 %v914
    %954 = vmatprep.subr.mxu0 0.0
    %955 = vmatpush1.msra.mxu0 %v913
    %956 = vmatprep.subr.mxu0 0.0
    %957 = vmatpush1.msra.mxu0 %v912
    %958 = vmatprep.subr.mxu0 0.0
    %959 = vmatpush1.msra.mxu0 %v911
    %960 = vmatprep.subr.mxu0 0.0
    %961 = vmatpush1.msra.mxu0 %v910
    %962 = vmatprep.subr.mxu0 0.0
    %963 = vmatpush1.msra.mxu0 %v909
    %964 = vmatprep.subr.mxu0 0.0
    %965 = vmatpush2.msra.mxu0 0.0
    %966 = vmatprep.subr.mxu0 0.0
    %967 = vmatpush2.msra.mxu0 0.0
    %968 = vmatprep.subr.mxu0 0.0
    %969 = vmatpush2.msra.mxu0 0.0
    %970 = vmatprep.subr.mxu0 0.0
    %971 = vmatpush2.msra.mxu0 0.0
    %972 = vmatprep.subr.mxu0 0.0
    %973 = vmatpush2.msra.mxu0 0.0
    %974 = vmatprep.subr.mxu0 0.0
    %975 = vmatpush2.msra.mxu0 0.0
    %976 = vmatprep.subr.mxu0 0.0
    %977 = vmatpush2.msra.mxu0 0.0
    %978 = vmatprep.subr.mxu0 0.0
    %979 = vmatpush2.msra.mxu0 0.0
    %980 = vmatprep.subr.mxu0 0.0
    %981 = vmatpush2.msra.mxu0 0.0
    %982 = vmatprep.subr.mxu0 0.0
    %983 = vmatpush2.msra.mxu0 0.0
    %984 = vmatprep.subr.mxu0 0.0
    %985 = vmatpush2.msra.mxu0 0.0
    %986 = vmatprep.subr.mxu0 0.0
    %987 = vmatpush2.msra.mxu0 0.0
    %988 = vmatprep.subr.mxu0 0.0
    %989 = vmatpush2.msra.mxu0 0.0
    %990 = vmatprep.subr.mxu0 0.0
    %991 = vmatpush2.msra.mxu0 0.0
    %992 = vmatprep.subr.mxu0 0.0
    %993 = vmatpush2.msra.mxu0 0.0
    %994 = vmatprep.subr.mxu0 0.0
    %995 = vmatpush2.msra.mxu0 0.0
    %996 = vmatprep.mubr.f32.mxu0 0.0
    %997 = vmatmul.mubr.f32.gmra.mxu0 %v908
    %v998 = vpop.f32.mrf.mxu0
    %v999 = vadd.f32 %v930, %v998
    %v1000 = vpop.f32.mrf.mxu0
    %1001 = vdwg.mxu0
    %1002 = vst [vmem:[#allocation7] sm:$0xff] %v999
    // Predicated region
    $region34: #{tpu_custom_call.1} parent=1 // pred_check
      _
    $region35: #{tpu_custom_call.1} parent=1 // pred_check_branch
      %1004 = sbr.rel (0) target = $region37
    $region36: #{tpu_custom_call.1} parent=1 // pred_region
      %s1006 = ssub.s32 128, 128
      %1007 = vsyncadd [#allocation4], %s1006
      %s1009 = sshll.u32 [#allocation7], 4
      %s1010 = int_to_ptr.vmem [resolvable:$true] %s1009
      %1012 = dma.vmem_to_hbm [thread:$0]  %s1010, 128, %s6, [#allocation4]
    $region37: #{tpu_custom_call.1} parent=1 // pred_fallthru
      _
    // Predicated region
    $region38: #{tpu_custom_call.1} parent=1 // pred_check
      _
    $region39: #{tpu_custom_call.1} parent=1 // pred_check_branch
      %1014 = sbr.rel (0) target = $region41
    $region40: #{tpu_custom_call.1} parent=1 // pred_region
      %1015 = dma.done [#allocation4], 128
    $region41: #{tpu_custom_call.1} parent=1 // pred_fallthru
      _
    %1016 = vsyncpa [#allocation3], 1
    %1017 = vsyncpa [#allocation6], 1
    %1018 = vsyncpa [#allocation4], 1

</llo_original>
